<compile_context>
chip_gen: v7x
topology: tpu7x:2x2x1
jax: 0.10.0
libtpu: 0.0.40
codegen_flags: <defaults>
</compile_context>

<pallas_src>
import jax
import jax.numpy as jnp
import numpy as np
from jax.experimental import pallas as pl
from jax.experimental.pallas import tpu as pltpu


def _cbam_kernel(patches_ref, w1t_ref, b1_ref, wm1t_ref, bm1_ref, wm2t_ref,
                 bm2_ref, wsp_ref, bs_ref, o_ref):
    # ---------------- conv1: 3x3, stride 1, pad 1 -> single MXU matmul ----------------
    y = jnp.dot(w1t_ref[...], patches_ref[0],
                preferred_element_type=jnp.float32) + b1_ref[...]        # (Cout, HW)

    # ---------------- channel attention (shared MLP run once on stacked avg|max) ------
    c_avg = jnp.mean(y, axis=1, keepdims=True)                           # (Cout, 1)
    c_max = jnp.max(y, axis=1, keepdims=True)                            # (Cout, 1)
    c = jnp.concatenate([c_avg, c_max], axis=1)                          # (Cout, 2)
    h1 = jnp.maximum(
        jnp.dot(wm1t_ref[...], c, preferred_element_type=jnp.float32)
        + bm1_ref[...], 0.0)                                             # (hidden, 2)
    m = (jnp.dot(wm2t_ref[...], h1, preferred_element_type=jnp.float32)
         + bm2_ref[...])                                                 # (Cout, 2)
    att = jax.nn.sigmoid(jnp.sum(m, axis=1, keepdims=True))              # (Cout, 1)
    fc = y * att                                                         # (Cout, HW)

    # ---------------- spatial attention: 7x7 conv (pad 3) as one matmul ---------------
    s_avg = jnp.mean(fc, axis=0, keepdims=True)                          # (1, HW)
    s_max = jnp.max(fc, axis=0, keepdims=True)                           # (1, HW)
    s = jnp.concatenate([s_avg, s_max], axis=1)                          # (1, 2*HW)
    logits = jnp.dot(s, wsp_ref[...],
                     preferred_element_type=jnp.float32) + bs_ref[0]     # (1, HW)
    fs = jax.nn.sigmoid(logits)

    # ---------------- fuse: out = y + y*channel_att*spatial_att -----------------------
    o_ref[0] = y + fc * fs


def _spatial_conv_operator(ws, H, W):
    """Repack the (2,7,7) conv_cbam weights into a (2*H*W, H*W) matmul operator that
    implements the zero-padded 7x7 conv over the concatenated [avg, max] maps.
    Weight-only preprocessing (no data involved)."""
    hi = jnp.arange(H)[:, None, None, None]
    wi = jnp.arange(W)[None, :, None, None]
    ho = jnp.arange(H)[None, None, :, None]
    wo = jnp.arange(W)[None, None, None, :]
    dh = hi - ho + 3
    dw = wi - wo + 3
    valid = (dh >= 0) & (dh < 7) & (dw >= 0) & (dw < 7)
    taps = ws[:, jnp.clip(dh, 0, 6), jnp.clip(dw, 0, 6)]                 # (2, H, W, H, W)
    return jnp.where(valid[None], taps, 0.0).reshape(2 * H * W, H * W)


def residual_block_cbam(x_nchw, p):
    B, C_in, H, W = x_nchw.shape
    C_out = p["b1"].shape[0]
    hidden = p["bm1"].shape[0]
    HW = H * W

    x = x_nchw.astype(jnp.float32)
    # im2col of the 3x3-conv input, channel-major: (B, 9*C_in, H*W) (pure rearrangement).
    # TODO(synk): at production H/W/C move this im2col inside the kernel (shifted
    # accumulation from a padded (C_in, H+2, W+2) block) to avoid the 9x HBM inflation
    # and keep the double-buffered block inside v7x's 64 MiB VMEM.
    xp = jnp.pad(x, ((0, 0), (0, 0), (1, 1), (1, 1)))
    patches = jnp.concatenate(
        [xp[:, :, kh:kh + H, kw:kw + W] for kh in range(3) for kw in range(3)],
        axis=1).reshape(B, 9 * C_in, HW)

    w1t = p["w1"].reshape(9 * C_in, C_out).T                             # (Cout, 9*Cin)
    b1 = p["b1"].reshape(C_out, 1)
    wm1t = p["wm1"].T                                                    # (hidden, Cout)
    bm1 = p["bm1"].reshape(hidden, 1)
    wm2t = p["wm2"].T                                                    # (Cout, hidden)
    bm2 = p["bm2"].reshape(C_out, 1)
    wsp = _spatial_conv_operator(p["ws"], H, W)                          # (2*HW, HW)
    bs = p["bs"].reshape(1)

    out = pl.pallas_call(
        _cbam_kernel,
        out_shape=jax.ShapeDtypeStruct((B, C_out, HW), jnp.float32),
        grid=(B,),
        in_specs=[
            pl.BlockSpec((1, 9 * C_in, HW), lambda b: (b, 0, 0)),
            pl.BlockSpec((C_out, 9 * C_in), lambda b: (0, 0)),
            pl.BlockSpec((C_out, 1), lambda b: (0, 0)),
            pl.BlockSpec((hidden, C_out), lambda b: (0, 0)),
            pl.BlockSpec((hidden, 1), lambda b: (0, 0)),
            pl.BlockSpec((C_out, hidden), lambda b: (0, 0)),
            pl.BlockSpec((C_out, 1), lambda b: (0, 0)),
            pl.BlockSpec((2 * HW, HW), lambda b: (0, 0)),
            pl.BlockSpec(memory_space=pltpu.MemorySpace.SMEM),           # conv_cbam bias
        ],
        out_specs=pl.BlockSpec((1, C_out, HW), lambda b: (b, 0, 0)),
        compiler_params=pltpu.CompilerParams(
            dimension_semantics=("parallel",)),
    )(patches, w1t, b1, wm1t, bm1, wm2t, bm2, wsp, bs)

    return out.reshape(B, C_out, H, W)                                   # already NCHW


def init_params(key, c_in, c_out, r=0.5):
    hidden = int(c_out * r)
    ks = jax.random.split(key, 8)
    return dict(
        w1=0.1 * jax.random.normal(ks[0], (3, 3, c_in, c_out), jnp.float32),   # HWIO
        b1=0.1 * jax.random.normal(ks[1], (c_out,), jnp.float32),
        wm1=0.1 * jax.random.normal(ks[2], (c_out, hidden), jnp.float32),
        bm1=0.1 * jax.random.normal(ks[3], (hidden,), jnp.float32),
        wm2=0.1 * jax.random.normal(ks[4], (hidden, c_out), jnp.float32),
        bm2=0.1 * jax.random.normal(ks[5], (c_out,), jnp.float32),
        ws=0.1 * jax.random.normal(ks[6], (2, 7, 7), jnp.float32),             # conv_cbam
        bs=0.1 * jax.random.normal(ks[7], (1,), jnp.float32),
    )


def reference(x_nchw, p):
    """Pure-JAX reference of the PyTorch forward (for correctness check)."""
    x = jnp.transpose(x_nchw, (0, 2, 3, 1))
    y = jax.lax.conv_general_dilated(
        x, p["w1"], (1, 1), "SAME",
        dimension_numbers=("NHWC", "HWIO", "NHWC")) + p["b1"]
    c_avg = y.mean(axis=(1, 2))
    c_max = y.max(axis=(1, 2))

    def mlp(v):
        return jnp.maximum(v @ p["wm1"] + p["bm1"], 0.0) @ p["wm2"] + p["bm2"]

    att = jax.nn.sigmoid(mlp(c_avg) + mlp(c_max))
    fc = y * att[:, None, None, :]
    s = jnp.concatenate([fc.mean(-1, keepdims=True), fc.max(-1, keepdims=True)], -1)
    w_s = jnp.transpose(p["ws"], (1, 2, 0))[:, :, :, None]               # (7,7,2,1) HWIO
    fs = jax.nn.sigmoid(jax.lax.conv_general_dilated(
        s, w_s, (1, 1), "SAME",
        dimension_numbers=("NHWC", "HWIO", "NHWC")) + p["bs"])
    out = y + fc * fs
    return jnp.transpose(out, (0, 3, 1, 2))


if __name__ == "__main__":
    key = jax.random.PRNGKey(0)
    kx, kp = jax.random.split(key)

    B, C, H, W = 2, 8, 16, 16          # in_channels == out_channels (see NOTE above)
    x = jax.random.normal(kx, (B, C, H, W), jnp.float32)
    params = init_params(kp, C, C, r=0.5)

    out = jax.jit(residual_block_cbam)(x, params)
    jax.block_until_ready(out)

    ref = reference(x, params)
    assert out.shape == (B, C, H, W)
    np.testing.assert_allclose(np.asarray(out), np.asarray(ref), rtol=1e-4, atol=1e-4)

    print("KERNEL_OK")
</pallas_src>

<mosaic_0001>
module attributes {stable_mosaic.version = 11 : i64} {
  func.func @_cbam_kernel(%arg0: i32, %arg1: memref<1x72x256xf32, #tpu.memory_space<vmem>>, %arg2: memref<8x72xf32, #tpu.memory_space<vmem>>, %arg3: memref<8x1xf32, #tpu.memory_space<vmem>>, %arg4: memref<4x8xf32, #tpu.memory_space<vmem>>, %arg5: memref<4x1xf32, #tpu.memory_space<vmem>>, %arg6: memref<8x4xf32, #tpu.memory_space<vmem>>, %arg7: memref<8x1xf32, #tpu.memory_space<vmem>>, %arg8: memref<512x256xf32, #tpu.memory_space<vmem>>, %arg9: memref<1xf32, #tpu.memory_space<smem>>, %arg10: memref<1x8x256xf32, #tpu.memory_space<vmem>>) attributes {dimension_semantics = [#tpu.dimension_semantics<parallel>], iteration_bounds = array<i64: 2>, scalar_prefetch = 0 : i64, scratch_operands = 0 : i64, tpu.core_type = #tpu.core_type<tc>, window_params = [{transform_indices = @transform_0, window_bounds = array<i64: 1, 72, 256>}, {pipeline_mode = #tpu.pipeline_mode<synchronous>, transform_indices = @transform_1, window_bounds = array<i64: 8, 72>}, {pipeline_mode = #tpu.pipeline_mode<synchronous>, transform_indices = @transform_2, window_bounds = array<i64: 8, 1>}, {pipeline_mode = #tpu.pipeline_mode<synchronous>, transform_indices = @transform_3, window_bounds = array<i64: 4, 8>}, {pipeline_mode = #tpu.pipeline_mode<synchronous>, transform_indices = @transform_4, window_bounds = array<i64: 4, 1>}, {pipeline_mode = #tpu.pipeline_mode<synchronous>, transform_indices = @transform_5, window_bounds = array<i64: 8, 4>}, {pipeline_mode = #tpu.pipeline_mode<synchronous>, transform_indices = @transform_6, window_bounds = array<i64: 8, 1>}, {pipeline_mode = #tpu.pipeline_mode<synchronous>, transform_indices = @transform_7, window_bounds = array<i64: 512, 256>}, {transform_indices = @transform_8, window_bounds = array<i64: 1>}, {transform_indices = @transform_9, window_bounds = array<i64: 1, 8, 256>}]} {
    %c0 = arith.constant 0 : index
    %c0_0 = arith.constant 0 : index
    %0 = vector.load %arg2[%c0, %c0_0] : memref<8x72xf32, #tpu.memory_space<vmem>>, vector<8x72xf32>
    %c0_1 = arith.constant 0 : index
    %c0_2 = arith.constant 0 : index
    %c0_3 = arith.constant 0 : index
    %1 = vector.load %arg1[%c0_1, %c0_2, %c0_3] : memref<1x72x256xf32, #tpu.memory_space<vmem>>, vector<1x72x256xf32>
    %2 = vector.shape_cast %1 : vector<1x72x256xf32> to vector<72x256xf32>
    %cst = arith.constant dense<0.000000e+00> : vector<8x256xf32>
    %3 = tpu.matmul %0, %2, %cst {dimension_numbers = #tpu.dot_dimension_numbers<[1], [0], [0], [1], [0, 0, 1, 1], [], []>} : vector<8x72xf32>, vector<72x256xf32>, vector<8x256xf32> -> vector<8x256xf32>
    %c0_4 = arith.constant 0 : index
    %c0_5 = arith.constant 0 : index
    %4 = vector.load %arg3[%c0_4, %c0_5] : memref<8x1xf32, #tpu.memory_space<vmem>>, vector<8x1xf32>
    %5 = vector.broadcast %4 : vector<8x1xf32> to vector<8x256xf32>
    %6 = arith.addf %3, %5 : vector<8x256xf32>
    %cst_6 = arith.constant dense<0.000000e+00> : vector<8xf32>
    %7 = vector.multi_reduction <add>, %6, %cst_6 [1] : vector<8x256xf32> to vector<8xf32>
    %8 = vector.shape_cast %7 : vector<8xf32> to vector<8x1xf32>
    %cst_7 = arith.constant 2.560000e+02 : f32
    %9 = vector.broadcast %cst_7 : f32 to vector<8x1xf32>
    %10 = arith.divf %8, %9 : vector<8x1xf32>
    %cst_8 = arith.constant dense<0xFF800000> : vector<8xf32>
    %11 = vector.multi_reduction <maximumf>, %6, %cst_8 [1] : vector<8x256xf32> to vector<8xf32>
    %12 = vector.shape_cast %11 : vector<8xf32> to vector<8x1xf32>
    %13 = tpu.concatenate %10, %12 in 1 : vector<8x1xf32>, vector<8x1xf32> -> vector<8x2xf32>
    %c0_9 = arith.constant 0 : index
    %c0_10 = arith.constant 0 : index
    %14 = vector.load %arg4[%c0_9, %c0_10] : memref<4x8xf32, #tpu.memory_space<vmem>>, vector<4x8xf32>
    %cst_11 = arith.constant dense<0.000000e+00> : vector<4x2xf32>
    %15 = tpu.matmul %14, %13, %cst_11 {dimension_numbers = #tpu.dot_dimension_numbers<[1], [0], [0], [1], [0, 0, 1, 1], [], []>} : vector<4x8xf32>, vector<8x2xf32>, vector<4x2xf32> -> vector<4x2xf32>
    %c0_12 = arith.constant 0 : index
    %c0_13 = arith.constant 0 : index
    %16 = vector.load %arg5[%c0_12, %c0_13] : memref<4x1xf32, #tpu.memory_space<vmem>>, vector<4x1xf32>
    %17 = vector.broadcast %16 : vector<4x1xf32> to vector<4x2xf32>
    %18 = arith.addf %15, %17 : vector<4x2xf32>
    %cst_14 = arith.constant 0.000000e+00 : f32
    %19 = vector.broadcast %cst_14 : f32 to vector<4x2xf32>
    %20 = arith.maximumf %18, %19 : vector<4x2xf32>
    %c0_15 = arith.constant 0 : index
    %c0_16 = arith.constant 0 : index
    %21 = vector.load %arg6[%c0_15, %c0_16] : memref<8x4xf32, #tpu.memory_space<vmem>>, vector<8x4xf32>
    %cst_17 = arith.constant dense<0.000000e+00> : vector<8x2xf32>
    %22 = tpu.matmul %21, %20, %cst_17 {dimension_numbers = #tpu.dot_dimension_numbers<[1], [0], [0], [1], [0, 0, 1, 1], [], []>} : vector<8x4xf32>, vector<4x2xf32>, vector<8x2xf32> -> vector<8x2xf32>
    %c0_18 = arith.constant 0 : index
    %c0_19 = arith.constant 0 : index
    %23 = vector.load %arg7[%c0_18, %c0_19] : memref<8x1xf32, #tpu.memory_space<vmem>>, vector<8x1xf32>
    %24 = vector.broadcast %23 : vector<8x1xf32> to vector<8x2xf32>
    %25 = arith.addf %22, %24 : vector<8x2xf32>
    %cst_20 = arith.constant dense<0.000000e+00> : vector<8xf32>
    %26 = vector.multi_reduction <add>, %25, %cst_20 [1] : vector<8x2xf32> to vector<8xf32>
    %27 = vector.shape_cast %26 : vector<8xf32> to vector<8x1xf32>
    %28 = arith.negf %27 : vector<8x1xf32>
    %29 = math.exp %28 : vector<8x1xf32>
    %cst_21 = arith.constant 1.000000e+00 : f32
    %30 = vector.broadcast %cst_21 : f32 to vector<8x1xf32>
    %31 = arith.addf %30, %29 : vector<8x1xf32>
    %32 = arith.divf %30, %31 : vector<8x1xf32>
    %33 = vector.broadcast %32 : vector<8x1xf32> to vector<8x256xf32>
    %34 = arith.mulf %6, %33 : vector<8x256xf32>
    %cst_22 = arith.constant dense<0.000000e+00> : vector<256xf32>
    %35 = vector.multi_reduction <add>, %34, %cst_22 [0] : vector<8x256xf32> to vector<256xf32>
    %36 = vector.shape_cast %35 : vector<256xf32> to vector<1x256xf32>
    %cst_23 = arith.constant 8.000000e+00 : f32
    %37 = vector.broadcast %cst_23 : f32 to vector<1x256xf32>
    %38 = arith.divf %36, %37 : vector<1x256xf32>
    %cst_24 = arith.constant dense<0xFF800000> : vector<256xf32>
    %39 = vector.multi_reduction <maximumf>, %34, %cst_24 [0] : vector<8x256xf32> to vector<256xf32>
    %40 = vector.shape_cast %39 : vector<256xf32> to vector<1x256xf32>
    %41 = tpu.concatenate %38, %40 in 1 : vector<1x256xf32>, vector<1x256xf32> -> vector<1x512xf32>
    %c0_25 = arith.constant 0 : index
    %c0_26 = arith.constant 0 : index
    %42 = vector.load %arg8[%c0_25, %c0_26] : memref<512x256xf32, #tpu.memory_space<vmem>>, vector<512x256xf32>
    %cst_27 = arith.constant dense<0.000000e+00> : vector<1x256xf32>
    %43 = tpu.matmul %41, %42, %cst_27 {dimension_numbers = #tpu.dot_dimension_numbers<[1], [0], [0], [1], [0, 0, 1, 1], [], []>} : vector<1x512xf32>, vector<512x256xf32>, vector<1x256xf32> -> vector<1x256xf32>
    %c0_28 = arith.constant 0 : index
    %44 = memref.load %arg9[%c0_28] : memref<1xf32, #tpu.memory_space<smem>>
    %45 = vector.broadcast %44 : f32 to vector<1x256xf32>
    %46 = arith.addf %43, %45 : vector<1x256xf32>
    %47 = arith.negf %46 : vector<1x256xf32>
    %48 = math.exp %47 : vector<1x256xf32>
    %cst_29 = arith.constant 1.000000e+00 : f32
    %49 = vector.broadcast %cst_29 : f32 to vector<1x256xf32>
    %50 = arith.addf %49, %48 : vector<1x256xf32>
    %51 = arith.divf %49, %50 : vector<1x256xf32>
    %52 = vector.broadcast %51 : vector<1x256xf32> to vector<8x256xf32>
    %53 = arith.mulf %34, %52 : vector<8x256xf32>
    %54 = arith.addf %6, %53 : vector<8x256xf32>
    %c0_30 = arith.constant 0 : index
    %c0_31 = arith.constant 0 : index
    %c0_32 = arith.constant 0 : index
    %55 = vector.load %arg10[%c0_30, %c0_31, %c0_32] : memref<1x8x256xf32, #tpu.memory_space<vmem>>, vector<1x8x256xf32>
    %56 = vector.shape_cast %55 : vector<1x8x256xf32> to vector<8x256xf32>
    %57 = vector.shape_cast %54 : vector<8x256xf32> to vector<1x8x256xf32>
    tpu.vector_store %arg10[%c0_30, %c0_31, %c0_32], %57 {strides = array<i32>} : memref<1x8x256xf32, #tpu.memory_space<vmem>>, vector<1x8x256xf32>,
    return
  }
  func.func @transform_0(%arg0: i32) -> (i32, i32, i32) {
    %c0_i32 = arith.constant 0 : i32
    %c0_i32_0 = arith.constant 0 : i32
    %c0_i32_1 = arith.constant 0 : i32
    return %arg0, %c0_i32, %c0_i32_0 : i32, i32, i32
  }
  func.func @transform_1(%arg0: i32) -> (i32, i32) {
    %c0_i32 = arith.constant 0 : i32
    %c0_i32_0 = arith.constant 0 : i32
    %c0_i32_1 = arith.constant 0 : i32
    return %c0_i32, %c0_i32_0 : i32, i32
  }
  func.func @transform_2(%arg0: i32) -> (i32, i32) {
    %c0_i32 = arith.constant 0 : i32
    %c0_i32_0 = arith.constant 0 : i32
    %c0_i32_1 = arith.constant 0 : i32
    return %c0_i32, %c0_i32_0 : i32, i32
  }
  func.func @transform_3(%arg0: i32) -> (i32, i32) {
    %c0_i32 = arith.constant 0 : i32
    %c0_i32_0 = arith.constant 0 : i32
    %c0_i32_1 = arith.constant 0 : i32
    return %c0_i32, %c0_i32_0 : i32, i32
  }
  func.func @transform_4(%arg0: i32) -> (i32, i32) {
    %c0_i32 = arith.constant 0 : i32
    %c0_i32_0 = arith.constant 0 : i32
    %c0_i32_1 = arith.constant 0 : i32
    return %c0_i32, %c0_i32_0 : i32, i32
  }
  func.func @transform_5(%arg0: i32) -> (i32, i32) {
    %c0_i32 = arith.constant 0 : i32
    %c0_i32_0 = arith.constant 0 : i32
    %c0_i32_1 = arith.constant 0 : i32
    return %c0_i32, %c0_i32_0 : i32, i32
  }
  func.func @transform_6(%arg0: i32) -> (i32, i32) {
    %c0_i32 = arith.constant 0 : i32
    %c0_i32_0 = arith.constant 0 : i32
    %c0_i32_1 = arith.constant 0 : i32
    return %c0_i32, %c0_i32_0 : i32, i32
  }
  func.func @transform_7(%arg0: i32) -> (i32, i32) {
    %c0_i32 = arith.constant 0 : i32
    %c0_i32_0 = arith.constant 0 : i32
    %c0_i32_1 = arith.constant 0 : i32
    return %c0_i32, %c0_i32_0 : i32, i32
  }
  func.func @transform_8(%arg0: i32) -> i32 {
    %c0_i32 = arith.constant 0 : i32
    %c0_i32_0 = arith.constant 0 : i32
    return %c0_i32 : i32
  }
  func.func @transform_9(%arg0: i32) -> (i32, i32, i32) {
    %c0_i32 = arith.constant 0 : i32
    %c0_i32_0 = arith.constant 0 : i32
    %c0_i32_1 = arith.constant 0 : i32
    return %arg0, %c0_i32, %c0_i32_0 : i32, i32, i32
  }
}

</mosaic_0001>

<llo_original>
// kernel: residual_block_cbam.1
$region0: #{residual_block_cbam.1}
  #allocation0 [shape = 'u32[]', space=smem, size = 0x4, offset = 0x4, fixed_abs, tag = 'smem constant byte address 0x4 - core index']
  #allocation1 [shape = 'u32[144,128]{1,0:T(1,128)}', space=vmem, size = 0x12000, scoped, tag = 'internal scratch']
  #allocation2 [shape = 'f32[1]{0:T(128)S(6)}', space=smem, size = 0x200, scoped, tag = 'scoped memory for residual_block_cbam.1']
  %s0 = inlined_call_operand.vmem [shape: f32[2,72,256], index: 0, kind: input, shape index: {}]
  %s1 = inlined_call_operand.vmem [shape: f32[8,72], index: 1, kind: input, shape index: {}]
  %s2 = inlined_call_operand.vmem [shape: f32[8,1], index: 2, kind: input, shape index: {}]
  %s3 = inlined_call_operand.vmem [shape: f32[4,8], index: 3, kind: input, shape index: {}]
  %s4 = inlined_call_operand.vmem [shape: f32[4,1], index: 4, kind: input, shape index: {}]
  %s5 = inlined_call_operand.vmem [shape: f32[8,4], index: 5, kind: input, shape index: {}]
  %s6 = inlined_call_operand.vmem [shape: f32[8,1], index: 6, kind: input, shape index: {}]
  %s7 = inlined_call_operand.vmem [shape: f32[512,256], index: 7, kind: input, shape index: {}]
  %s8 = inlined_call_operand.<no memory space> [shape: f32[1], index: 8, kind: input, shape index: {}]
  %s9 = inlined_call_operand.vmem [shape: f32[2,8,256], index: 9, kind: output, shape index: {}]
  %s10 = sld [smem:[#allocation0]]
  $region69: #{residual_block_cbam.1} parent=0
    _
  %s12 = ssub.s32 1, %s10
  %s13 = scalar_select 0, %s12, %s10
  %14 = sst [smem:[#allocation2]] %s8
  loop: start=0, step=1, limit=4
  $region2: #{residual_block_cbam.1} parent=0 // loop_pre_header
    _
  $region3: #{residual_block_cbam.1} parent=0 // loop_header
    %s16 = sphi 0, %s20
    %p17 = scmp.ge.s32.totalorder %s16, 4
    %s26 = sphi 0, %s28
    %s29 = sphi 0, %s26
    %s30 = sphi 0, %s29
    %s46 = sphi 0, %s30
    %s50 = sphi 0, %s50
    %s52 = sphi 0, %s50
    %s53 = sphi 0, %s52
    %s67 = sphi 0, %s53
    %s71 = sphi 0, %s71
    %s73 = sphi 0, %s71
    %s74 = sphi 0, %s73
    %s88 = sphi 0, %s74
    %s92 = sphi 0, %s92
    %s94 = sphi 0, %s92
    %s95 = sphi 0, %s94
    %s109 = sphi 0, %s95
    %s113 = sphi 0, %s113
    %s115 = sphi 0, %s113
    %s116 = sphi 0, %s115
    %s130 = sphi 0, %s116
    %s134 = sphi 0, %s134
    %s136 = sphi 0, %s134
    %s137 = sphi 0, %s136
    %s151 = sphi 0, %s137
    %s155 = sphi 0, %s155
    %s157 = sphi 0, %s155
    %s158 = sphi 0, %s157
    %s172 = sphi 0, %s158
    %s176 = sphi 0, %s176
    %s178 = sphi 0, %s176
    %s179 = sphi 0, %s178
    %s193 = sphi 0, %s179
    %s197 = sphi 0, %s197
    %s199 = sphi 0, %s197
    %s200 = sphi 0, %s199
    %s214 = sphi 0, %s200
    %s220 = sphi 0, %s222
    %s223 = sphi 0, %s220
    %s224 = sphi 0, %s223
    %s240 = sphi 0, %s224
  $region4: #{residual_block_cbam.1} parent=0 // loop_header_branch
    %19 = sbr.rel (%p17) target = $region8
  $region5: #{residual_block_cbam.1} parent=0 // loop_body
    %s21 = ssub.s32 %s16, 1
    %s22 = ssub.s32 %s16, 2
    %s23 = sadd.s32 %s16, 1
    %s24 = ssub.s32 %s16, %s23
    %p25 = scmp.eq.s32.totalorder %s24, 0
    %s27 = sadd.s32 %s26, 1
    %s28 = scalar_select %p25, %s26, %s27
    %p31 = pneg %p25
    %p32 = scmp.eq.s32.totalorder %s16, 1
    %p33 = por %p31, %p32
    %p34 = scmp.ne.s32.totalorder %s26, %s29
    %p35 = scmp.eq.s32.totalorder %s16, 0
    %p36 = por %p34, %p35
    %p37 = scmp.ne.s32.totalorder %s26, %s29
    %p38 = scmp.eq.s32.totalorder %s21, 1
    %p39 = por %p37, %p38
    %p40 = scmp.ne.s32.totalorder %s29, %s30
    %p41 = scmp.eq.s32.totalorder %s21, 0
    %p42 = por %p40, %p41
    %p43 = scmp.ne.s32.totalorder %s29, %s30
    %p44 = scmp.eq.s32.totalorder %s22, 1
    %p45 = por %p43, %p44
    %p47 = scmp.ne.s32.totalorder %s30, %s46
    %p48 = scmp.eq.s32.totalorder %s22, 0
    %p49 = por %p47, %p48
    %s51 = sadd.s32 %s50, 1
    %p54 = scmp.eq.s32.totalorder %s16, 1
    %p55 = scmp.ne.s32.totalorder %s50, %s52
    %p56 = scmp.eq.s32.totalorder %s16, 0
    %p57 = por %p55, %p56
    %p58 = scmp.ne.s32.totalorder %s50, %s52
    %p59 = scmp.eq.s32.totalorder %s21, 1
    %p60 = por %p58, %p59
    %p61 = scmp.ne.s32.totalorder %s52, %s53
    %p62 = scmp.eq.s32.totalorder %s21, 0
    %p63 = por %p61, %p62
    %p64 = scmp.ne.s32.totalorder %s52, %s53
    %p65 = scmp.eq.s32.totalorder %s22, 1
    %p66 = por %p64, %p65
    %p68 = scmp.ne.s32.totalorder %s53, %s67
    %p69 = scmp.eq.s32.totalorder %s22, 0
    %p70 = por %p68, %p69
    %s72 = sadd.s32 %s71, 1
    %p75 = scmp.eq.s32.totalorder %s16, 1
    %p76 = scmp.ne.s32.totalorder %s71, %s73
    %p77 = scmp.eq.s32.totalorder %s16, 0
    %p78 = por %p76, %p77
    %p79 = scmp.ne.s32.totalorder %s71, %s73
    %p80 = scmp.eq.s32.totalorder %s21, 1
    %p81 = por %p79, %p80
    %p82 = scmp.ne.s32.totalorder %s73, %s74
    %p83 = scmp.eq.s32.totalorder %s21, 0
    %p84 = por %p82, %p83
    %p85 = scmp.ne.s32.totalorder %s73, %s74
    %p86 = scmp.eq.s32.totalorder %s22, 1
    %p87 = por %p85, %p86
    %p89 = scmp.ne.s32.totalorder %s74, %s88
    %p90 = scmp.eq.s32.totalorder %s22, 0
    %p91 = por %p89, %p90
    %s93 = sadd.s32 %s92, 1
    %p96 = scmp.eq.s32.totalorder %s16, 1
    %p97 = scmp.ne.s32.totalorder %s92, %s94
    %p98 = scmp.eq.s32.totalorder %s16, 0
    %p99 = por %p97, %p98
    %p100 = scmp.ne.s32.totalorder %s92, %s94
    %p101 = scmp.eq.s32.totalorder %s21, 1
    %p102 = por %p100, %p101
    %p103 = scmp.ne.s32.totalorder %s94, %s95
    %p104 = scmp.eq.s32.totalorder %s21, 0
    %p105 = por %p103, %p104
    %p106 = scmp.ne.s32.totalorder %s94, %s95
    %p107 = scmp.eq.s32.totalorder %s22, 1
    %p108 = por %p106, %p107
    %p110 = scmp.ne.s32.totalorder %s95, %s109
    %p111 = scmp.eq.s32.totalorder %s22, 0
    %p112 = por %p110, %p111
    %s114 = sadd.s32 %s113, 1
    %p117 = scmp.eq.s32.totalorder %s16, 1
    %p118 = scmp.ne.s32.totalorder %s113, %s115
    %p119 = scmp.eq.s32.totalorder %s16, 0
    %p120 = por %p118, %p119
    %p121 = scmp.ne.s32.totalorder %s113, %s115
    %p122 = scmp.eq.s32.totalorder %s21, 1
    %p123 = por %p121, %p122
    %p124 = scmp.ne.s32.totalorder %s115, %s116
    %p125 = scmp.eq.s32.totalorder %s21, 0
    %p126 = por %p124, %p125
    %p127 = scmp.ne.s32.totalorder %s115, %s116
    %p128 = scmp.eq.s32.totalorder %s22, 1
    %p129 = por %p127, %p128
    %p131 = scmp.ne.s32.totalorder %s116, %s130
    %p132 = scmp.eq.s32.totalorder %s22, 0
    %p133 = por %p131, %p132
    %s135 = sadd.s32 %s134, 1
    %p138 = scmp.eq.s32.totalorder %s16, 1
    %p139 = scmp.ne.s32.totalorder %s134, %s136
    %p140 = scmp.eq.s32.totalorder %s16, 0
    %p141 = por %p139, %p140
    %p142 = scmp.ne.s32.totalorder %s134, %s136
    %p143 = scmp.eq.s32.totalorder %s21, 1
    %p144 = por %p142, %p143
    %p145 = scmp.ne.s32.totalorder %s136, %s137
    %p146 = scmp.eq.s32.totalorder %s21, 0
    %p147 = por %p145, %p146
    %p148 = scmp.ne.s32.totalorder %s136, %s137
    %p149 = scmp.eq.s32.totalorder %s22, 1
    %p150 = por %p148, %p149
    %p152 = scmp.ne.s32.totalorder %s137, %s151
    %p153 = scmp.eq.s32.totalorder %s22, 0
    %p154 = por %p152, %p153
    %s156 = sadd.s32 %s155, 1
    %p159 = scmp.eq.s32.totalorder %s16, 1
    %p160 = scmp.ne.s32.totalorder %s155, %s157
    %p161 = scmp.eq.s32.totalorder %s16, 0
    %p162 = por %p160, %p161
    %p163 = scmp.ne.s32.totalorder %s155, %s157
    %p164 = scmp.eq.s32.totalorder %s21, 1
    %p165 = por %p163, %p164
    %p166 = scmp.ne.s32.totalorder %s157, %s158
    %p167 = scmp.eq.s32.totalorder %s21, 0
    %p168 = por %p166, %p167
    %p169 = scmp.ne.s32.totalorder %s157, %s158
    %p170 = scmp.eq.s32.totalorder %s22, 1
    %p171 = por %p169, %p170
    %p173 = scmp.ne.s32.totalorder %s158, %s172
    %p174 = scmp.eq.s32.totalorder %s22, 0
    %p175 = por %p173, %p174
    %s177 = sadd.s32 %s176, 1
    %p180 = scmp.eq.s32.totalorder %s16, 1
    %p181 = scmp.ne.s32.totalorder %s176, %s178
    %p182 = scmp.eq.s32.totalorder %s16, 0
    %p183 = por %p181, %p182
    %p184 = scmp.ne.s32.totalorder %s176, %s178
    %p185 = scmp.eq.s32.totalorder %s21, 1
    %p186 = por %p184, %p185
    %p187 = scmp.ne.s32.totalorder %s178, %s179
    %p188 = scmp.eq.s32.totalorder %s21, 0
    %p189 = por %p187, %p188
    %p190 = scmp.ne.s32.totalorder %s178, %s179
    %p191 = scmp.eq.s32.totalorder %s22, 1
    %p192 = por %p190, %p191
    %p194 = scmp.ne.s32.totalorder %s179, %s193
    %p195 = scmp.eq.s32.totalorder %s22, 0
    %p196 = por %p194, %p195
    %s198 = sadd.s32 %s197, 1
    %p201 = scmp.eq.s32.totalorder %s16, 1
    %p202 = scmp.ne.s32.totalorder %s197, %s199
    %p203 = scmp.eq.s32.totalorder %s16, 0
    %p204 = por %p202, %p203
    %p205 = scmp.ne.s32.totalorder %s197, %s199
    %p206 = scmp.eq.s32.totalorder %s21, 1
    %p207 = por %p205, %p206
    %p208 = scmp.ne.s32.totalorder %s199, %s200
    %p209 = scmp.eq.s32.totalorder %s21, 0
    %p210 = por %p208, %p209
    %p211 = scmp.ne.s32.totalorder %s199, %s200
    %p212 = scmp.eq.s32.totalorder %s22, 1
    %p213 = por %p211, %p212
    %p215 = scmp.ne.s32.totalorder %s200, %s214
    %p216 = scmp.eq.s32.totalorder %s22, 0
    %p217 = por %p215, %p216
    %s218 = ssub.s32 %s16, %s23
    %p219 = scmp.eq.s32.totalorder %s218, 0
    %s221 = sadd.s32 %s220, 1
    %s222 = scalar_select %p219, %s220, %s221
    %p225 = pneg %p219
    %p226 = scmp.eq.s32.totalorder %s16, 1
    %p227 = por %p225, %p226
    %p228 = scmp.ne.s32.totalorder %s220, %s223
    %p229 = scmp.eq.s32.totalorder %s16, 0
    %p230 = por %p228, %p229
    %p231 = scmp.ne.s32.totalorder %s220, %s223
    %p232 = scmp.eq.s32.totalorder %s21, 1
    %p233 = por %p231, %p232
    %p234 = scmp.ne.s32.totalorder %s223, %s224
    %p235 = scmp.eq.s32.totalorder %s21, 0
    %p236 = por %p234, %p235
    %p237 = scmp.ne.s32.totalorder %s223, %s224
    %p238 = scmp.eq.s32.totalorder %s22, 1
    %p239 = por %p237, %p238
    %p241 = scmp.ne.s32.totalorder %s224, %s240
    %p242 = scmp.eq.s32.totalorder %s22, 0
    %p243 = por %p241, %p242
    %p244 = scmp.le.s32.totalorder 1, %s16
    %p245 = scmp.lt.s32.totalorder %s16, 3
    %p246 = pnand %p244, %p245
    %p247 = pneg %p246
    // Predicated region
    $region9: #{residual_block_cbam.1} parent=5 // pred_check
      _
    $region10: #{residual_block_cbam.1} parent=5 // pred_check_branch
      %249 = sbr.rel (%p246) target = $region12
    $region11: #{residual_block_cbam.1} parent=5 // pred_region
      %s250 = ssub.s32 %s16, 1
      // Predicated region
      $region13: #{residual_block_cbam.1} parent=11 // pred_check
        %p251 = pneg %p63
      $region14: #{residual_block_cbam.1} parent=11 // pred_check_branch
        %253 = sbr.rel (%p251) target = $region16
      $region15: #{residual_block_cbam.1} parent=11 // pred_region
        _
      $region16: #{residual_block_cbam.1} parent=11 // pred_fallthru
        _
      // Predicated region
      $region17: #{residual_block_cbam.1} parent=11 // pred_check
        %p254 = pneg %p84
      $region18: #{residual_block_cbam.1} parent=11 // pred_check_branch
        %256 = sbr.rel (%p254) target = $region20
      $region19: #{residual_block_cbam.1} parent=11 // pred_region
        _
      $region20: #{residual_block_cbam.1} parent=11 // pred_fallthru
        _
      // Predicated region
      $region21: #{residual_block_cbam.1} parent=11 // pred_check
        %p257 = pneg %p105
      $region22: #{residual_block_cbam.1} parent=11 // pred_check_branch
        %259 = sbr.rel (%p257) target = $region24
      $region23: #{residual_block_cbam.1} parent=11 // pred_region
        _
      $region24: #{residual_block_cbam.1} parent=11 // pred_fallthru
        _
      // Predicated region
      $region25: #{residual_block_cbam.1} parent=11 // pred_check
        %p260 = pneg %p126
      $region26: #{residual_block_cbam.1} parent=11 // pred_check_branch
        %262 = sbr.rel (%p260) target = $region28
      $region27: #{residual_block_cbam.1} parent=11 // pred_region
        _
      $region28: #{residual_block_cbam.1} parent=11 // pred_fallthru
        _
      // Predicated region
      $region29: #{residual_block_cbam.1} parent=11 // pred_check
        %p263 = pneg %p147
      $region30: #{residual_block_cbam.1} parent=11 // pred_check_branch
        %265 = sbr.rel (%p263) target = $region32
      $region31: #{residual_block_cbam.1} parent=11 // pred_region
        _
      $region32: #{residual_block_cbam.1} parent=11 // pred_fallthru
        _
      // Predicated region
      $region33: #{residual_block_cbam.1} parent=11 // pred_check
        %p266 = pneg %p168
      $region34: #{residual_block_cbam.1} parent=11 // pred_check_branch
        %268 = sbr.rel (%p266) target = $region36
      $region35: #{residual_block_cbam.1} parent=11 // pred_region
        _
      $region36: #{residual_block_cbam.1} parent=11 // pred_fallthru
        _
      // Predicated region
      $region37: #{residual_block_cbam.1} parent=11 // pred_check
        %p269 = pneg %p189
      $region38: #{residual_block_cbam.1} parent=11 // pred_check_branch
        %271 = sbr.rel (%p269) target = $region40
      $region39: #{residual_block_cbam.1} parent=11 // pred_region
        _
      $region40: #{residual_block_cbam.1} parent=11 // pred_fallthru
        _
      // Predicated region
      $region41: #{residual_block_cbam.1} parent=11 // pred_check
        %p272 = pneg %p210
      $region42: #{residual_block_cbam.1} parent=11 // pred_check_branch
        %274 = sbr.rel (%p272) target = $region44
      $region43: #{residual_block_cbam.1} parent=11 // pred_region
        _
      $region44: #{residual_block_cbam.1} parent=11 // pred_fallthru
        _
    $region12: #{residual_block_cbam.1} parent=5 // pred_fallthru
      _
    %p275 = scmp.lt.s32.totalorder %s16, 2
    // Predicated region
    $region45: #{residual_block_cbam.1} parent=5 // pred_check
      %p276 = pneg %p275
    $region46: #{residual_block_cbam.1} parent=5 // pred_check_branch
      %278 = sbr.rel (%p276) target = $region48
    $region47: #{residual_block_cbam.1} parent=5 // pred_region
      // Predicated region
      $region49: #{residual_block_cbam.1} parent=47 // pred_check
        %p279 = pneg %p36
      $region50: #{residual_block_cbam.1} parent=47 // pred_check_branch
        %281 = sbr.rel (%p279) target = $region52
      $region51: #{residual_block_cbam.1} parent=47 // pred_region
        %p282 = scmp.lt.s32.totalorder %s16, 1
        %s283 = scalar_select %p282, %s16, 1
        %s284 = smul.addr %s283, 18
        %s285 = smul.addr %s284, 8
        %s286 = scalar_lea.vmem %s0, %s285
      $region52: #{residual_block_cbam.1} parent=47 // pred_fallthru
        _
    $region48: #{residual_block_cbam.1} parent=5 // pred_fallthru
      _
    %p287 = scmp.le.s32.totalorder 1, %s16
    %p288 = scmp.lt.s32.totalorder %s16, 3
    %p289 = pnand %p287, %p288
    %p290 = pneg %p289
    // Predicated region
    $region53: #{residual_block_cbam.1} parent=5 // pred_check
      _
    $region54: #{residual_block_cbam.1} parent=5 // pred_check_branch
      %292 = sbr.rel (%p289) target = $region56
    $region55: #{residual_block_cbam.1} parent=5 // pred_region
      %s293 = ssub.s32 %s16, 1
      %p294 = scmp.lt.s32.totalorder %s21, 1
      %s295 = scalar_select %p294, %s21, 1
      %s296 = smul.addr %s295, 18
      %s297 = smul.addr %s296, 8
      %s298 = scalar_lea.vmem %s0, %s297
      %p299 = pneg %p42
      %p300 = pneg %p39
      %p301 = pneg %p63
      %p302 = pneg %p60
      %p303 = pneg %p84
      %p304 = pneg %p81
      %p305 = pneg %p105
      %p306 = pneg %p102
      %p307 = pneg %p126
      %p308 = pneg %p123
      %p309 = pneg %p147
      %p310 = pneg %p144
      %p311 = pneg %p168
      %p312 = pneg %p165
      %p313 = pneg %p189
      %p314 = pneg %p186
      %p315 = pneg %p210
      %p316 = pneg %p207
      %p317 = pneg %p236
      %p318 = pneg %p233
      %p319 = scmp.lt.s32.totalorder %s21, 1
      %s320 = scalar_select %p319, %s21, 1
      %s321 = smul.addr %s320, 2
      %s322 = smul.addr %s321, 8
      %s323 = scalar_lea.vmem %s9, %s322
      %p324 = scmp.lt.s32.totalorder %s21, 1
      %s325 = scalar_select %p324, %s21, 1
      %s326 = smul.addr %s325, 18
      %s327 = smul.addr %s326, 8
      %s328 = scalar_lea.vmem %s0, %s327
      %p329 = scmp.lt.s32.totalorder %s21, 1
      %s330 = scalar_select %p329, %s21, 1
      %s331 = smul.addr %s330, 2
      %s332 = smul.addr %s331, 8
      %s333 = scalar_lea.vmem %s9, %s332
      %v334 = vld [vmem:[%s1] sm:$0xff]
      %v335 = vld [vmem:[%s328] sm:$0xff]
      %v336 = vld [vmem:[%s328 + $0x8] sm:$0xff]
      %v337 = vld [vmem:[%s328 + $0x10] sm:$0xff]
      %v338 = vld [vmem:[%s328 + $0x18] sm:$0xff]
      %v339 = vld [vmem:[%s328 + $0x20] sm:$0xff]
      %v340 = vld [vmem:[%s328 + $0x28] sm:$0xff]
      %v341 = vld [vmem:[%s328 + $0x30] sm:$0xff]
      %v342 = vld [vmem:[%s328 + $0x38] sm:$0xff]
      %v343 = vld [vmem:[%s328 + $0x40] sm:$0xff]
      %v344 = vld [vmem:[%s328 + $0x48] sm:$0xff]
      %v345 = vld [vmem:[%s328 + $0x50] sm:$0xff]
      %v346 = vld [vmem:[%s328 + $0x58] sm:$0xff]
      %v347 = vld [vmem:[%s328 + $0x60] sm:$0xff]
      %v348 = vld [vmem:[%s328 + $0x68] sm:$0xff]
      %v349 = vld [vmem:[%s328 + $0x70] sm:$0xff]
      %v350 = vld [vmem:[%s328 + $0x78] sm:$0xff]
      %v351 = vld [vmem:[%s328 + $0x80] sm:$0xff]
      %v352 = vld [vmem:[%s328 + $0x88] sm:$0xff]
      %v353 = vld [vmem:[%s2] sm:$0xff]
      %355 = vset.pattern.permute.xlu0 0
      %356 = vperm.xlu0 %355, %v353
      %v357 = vpop.permute.xlu0 %356
      %vm359 = vcmask 588800
      %v361 = vsel %vm359, %v334, 0
      %363 = vmatprep.subr.mxu0 %v336
      %364 = vmatpush1.msra.mxu0 %v335
      %365 = vmatprep.subr.mxu0 %v338
      %366 = vmatpush1.msra.mxu0 %v337
      %367 = vmatprep.subr.mxu0 %v340
      %368 = vmatpush1.msra.mxu0 %v339
      %369 = vmatprep.subr.mxu0 %v342
      %370 = vmatpush1.msra.mxu0 %v341
      %371 = vmatprep.subr.mxu0 %v344
      %372 = vmatpush1.msra.mxu0 %v343
      %373 = vmatprep.subr.mxu0 %v346
      %374 = vmatpush1.msra.mxu0 %v345
      %375 = vmatprep.subr.mxu0 %v348
      %376 = vmatpush1.msra.mxu0 %v347
      %377 = vmatprep.subr.mxu0 %v350
      %378 = vmatpush1.msra.mxu0 %v349
      %379 = vmatprep.subr.mxu0 %v352
      %380 = vmatpush1.msra.mxu0 %v351
      %381 = vmatprep.subr.mxu0 0.0
      %382 = vmatpush1.msra.mxu0 0.0
      %383 = vmatprep.subr.mxu0 0.0
      %384 = vmatpush1.msra.mxu0 0.0
      %385 = vmatprep.subr.mxu0 0.0
      %386 = vmatpush1.msra.mxu0 0.0
      %387 = vmatprep.subr.mxu0 0.0
      %388 = vmatpush1.msra.mxu0 0.0
      %389 = vmatprep.subr.mxu0 0.0
      %390 = vmatpush1.msra.mxu0 0.0
      %391 = vmatprep.subr.mxu0 0.0
      %392 = vmatpush1.msra.mxu0 0.0
      %393 = vmatprep.subr.mxu0 0.0
      %394 = vmatpush1.msra.mxu0 0.0
      %395 = vmatprep.subr.mxu0 0.0
      %396 = vmatpush1.msra.mxu0 0.0
      %397 = vmatprep.subr.mxu0 0.0
      %398 = vmatpush1.msra.mxu0 0.0
      %399 = vmatprep.subr.mxu0 0.0
      %400 = vmatpush1.msra.mxu0 0.0
      %401 = vmatprep.subr.mxu0 0.0
      %402 = vmatpush1.msra.mxu0 0.0
      %403 = vmatprep.subr.mxu0 0.0
      %404 = vmatpush1.msra.mxu0 0.0
      %405 = vmatprep.subr.mxu0 0.0
      %406 = vmatpush1.msra.mxu0 0.0
      %407 = vmatprep.subr.mxu0 0.0
      %408 = vmatpush1.msra.mxu0 0.0
      %409 = vmatprep.subr.mxu0 0.0
      %410 = vmatpush1.msra.mxu0 0.0
      %411 = vmatprep.subr.mxu0 0.0
      %412 = vmatpush1.msra.mxu0 0.0
      %413 = vmatprep.subr.mxu0 0.0
      %414 = vmatpush1.msra.mxu0 0.0
      %415 = vmatprep.subr.mxu0 0.0
      %416 = vmatpush1.msra.mxu0 0.0
      %417 = vmatprep.subr.mxu0 0.0
      %418 = vmatpush1.msra.mxu0 0.0
      %419 = vmatprep.subr.mxu0 0.0
      %420 = vmatpush1.msra.mxu0 0.0
      %421 = vmatprep.subr.mxu0 0.0
      %422 = vmatpush1.msra.mxu0 0.0
      %423 = vmatprep.subr.mxu0 0.0
      %424 = vmatpush1.msra.mxu0 0.0
      %425 = vmatprep.subr.mxu0 0.0
      %426 = vmatpush1.msra.mxu0 0.0
      %427 = vmatprep.mubr.f32.mxu0 0.0
      %428 = vmatmul.mubr.f32.gmra.mrb[0].mxu0 %v361
      %v429 = vpop.f32.mrb[0].mxu0
      %v430 = vadd.f32 %v357, %v429
      %v431 = vpop.f32.mrb[0].mxu0
      %v432 = vadd.f32 %v357, %v431
      %433 = vdwg.mxu0
      %v434 = vadd.f32 %v430, %v432
      %435 = vadd.xlane.f32.xlu0 %v434
      %v436 = vpop.xlane.xlu0 %435
      %v437 = vrcp.pop 256.0
      %v438 = vmul.f32 %v436, %v437
      %v439 = vmax.f32 %v430, %v432
      %440 = vmax.xlane.f32.xlu0 %v439
      %v441 = vpop.xlane.xlu0 %440
      %vm442 = vcmask 7168
      %v443 = vsel %vm442, %v438, %v441
      %v444 = vld [vmem:[%s3] sm:$0xf]
      %v445 = vld [vmem:[%s4] sm:$0xf]
      %447 = vset.pattern.permute.xlu0 0
      %448 = vperm.xlu0 %447, %v445
      %v449 = vpop.permute.xlu0 %448
      %vm451 = vcmask 64512
      %v453 = vsel %vm451, %v444, 0
      %455 = vmatprep.subr.mxu0 0.0
      %456 = vmatpush1.msra.mxu0 %v443
      %457 = vmatprep.subr.mxu0 0.0
      %458 = vmatpush1.msra.mxu0 0.0
      %459 = vmatprep.subr.mxu0 0.0
      %460 = vmatpush1.msra.mxu0 0.0
      %461 = vmatprep.subr.mxu0 0.0
      %462 = vmatpush1.msra.mxu0 0.0
      %463 = vmatprep.subr.mxu0 0.0
      %464 = vmatpush1.msra.mxu0 0.0
      %465 = vmatprep.subr.mxu0 0.0
      %466 = vmatpush1.msra.mxu0 0.0
      %467 = vmatprep.subr.mxu0 0.0
      %468 = vmatpush1.msra.mxu0 0.0
      %469 = vmatprep.subr.mxu0 0.0
      %470 = vmatpush1.msra.mxu0 0.0
      %471 = vmatprep.subr.mxu0 0.0
      %472 = vmatpush1.msra.mxu0 0.0
      %473 = vmatprep.subr.mxu0 0.0
      %474 = vmatpush1.msra.mxu0 0.0
      %475 = vmatprep.subr.mxu0 0.0
      %476 = vmatpush1.msra.mxu0 0.0
      %477 = vmatprep.subr.mxu0 0.0
      %478 = vmatpush1.msra.mxu0 0.0
      %479 = vmatprep.subr.mxu0 0.0
      %480 = vmatpush1.msra.mxu0 0.0
      %481 = vmatprep.subr.mxu0 0.0
      %482 = vmatpush1.msra.mxu0 0.0
      %483 = vmatprep.subr.mxu0 0.0
      %484 = vmatpush1.msra.mxu0 0.0
      %485 = vmatprep.subr.mxu0 0.0
      %486 = vmatpush1.msra.mxu0 0.0
      %487 = vmatprep.subr.mxu0 0.0
      %488 = vmatpush1.msra.mxu0 0.0
      %489 = vmatprep.subr.mxu0 0.0
      %490 = vmatpush1.msra.mxu0 0.0
      %491 = vmatprep.subr.mxu0 0.0
      %492 = vmatpush1.msra.mxu0 0.0
      %493 = vmatprep.subr.mxu0 0.0
      %494 = vmatpush1.msra.mxu0 0.0
      %495 = vmatprep.subr.mxu0 0.0
      %496 = vmatpush1.msra.mxu0 0.0
      %497 = vmatprep.subr.mxu0 0.0
      %498 = vmatpush1.msra.mxu0 0.0
      %499 = vmatprep.subr.mxu0 0.0
      %500 = vmatpush1.msra.mxu0 0.0
      %501 = vmatprep.subr.mxu0 0.0
      %502 = vmatpush1.msra.mxu0 0.0
      %503 = vmatprep.subr.mxu0 0.0
      %504 = vmatpush1.msra.mxu0 0.0
      %505 = vmatprep.subr.mxu0 0.0
      %506 = vmatpush1.msra.mxu0 0.0
      %507 = vmatprep.subr.mxu0 0.0
      %508 = vmatpush1.msra.mxu0 0.0
      %509 = vmatprep.subr.mxu0 0.0
      %510 = vmatpush1.msra.mxu0 0.0
      %511 = vmatprep.subr.mxu0 0.0
      %512 = vmatpush1.msra.mxu0 0.0
      %513 = vmatprep.subr.mxu0 0.0
      %514 = vmatpush1.msra.mxu0 0.0
      %515 = vmatprep.subr.mxu0 0.0
      %516 = vmatpush1.msra.mxu0 0.0
      %517 = vmatprep.subr.mxu0 0.0
      %518 = vmatpush1.msra.mxu0 0.0
      %519 = vmatprep.mubr.f32.mxu0 0.0
      %520 = vmatmul.mubr.f32.gmra.mrb[0].mxu0 %v453
      %v521 = vpop.f32.mrb[0].mxu0
      %v522 = vadd.f32 %v449, %v521
      %v523 = vpop.f32.mrb[0].mxu0
      %524 = vdwg.mxu0
      %v525 = vmax.f32 %v522, 0.0
      %v526 = vld [vmem:[%s5] sm:$0xff]
      %v527 = vld [vmem:[%s6] sm:$0xff]
      %529 = vset.pattern.permute.xlu0 0
      %530 = vperm.xlu0 %529, %v527
      %v531 = vpop.permute.xlu0 %530
      %vm533 = vcmask 31744
      %v535 = vsel %vm533, %v526, 0
      %vm537 = vcmask 1043456
      %v539 = vsel %vm537, %v525, 0
      %541 = vmatprep.subr.mxu0 0.0
      %542 = vmatpush1.msra.mxu0 %v539
      %543 = vmatprep.subr.mxu0 0.0
      %544 = vmatpush1.msra.mxu0 0.0
      %545 = vmatprep.subr.mxu0 0.0
      %546 = vmatpush1.msra.mxu0 0.0
      %547 = vmatprep.subr.mxu0 0.0
      %548 = vmatpush1.msra.mxu0 0.0
      %549 = vmatprep.subr.mxu0 0.0
      %550 = vmatpush1.msra.mxu0 0.0
      %551 = vmatprep.subr.mxu0 0.0
      %552 = vmatpush1.msra.mxu0 0.0
      %553 = vmatprep.subr.mxu0 0.0
      %554 = vmatpush1.msra.mxu0 0.0
      %555 = vmatprep.subr.mxu0 0.0
      %556 = vmatpush1.msra.mxu0 0.0
      %557 = vmatprep.subr.mxu0 0.0
      %558 = vmatpush1.msra.mxu0 0.0
      %559 = vmatprep.subr.mxu0 0.0
      %560 = vmatpush1.msra.mxu0 0.0
      %561 = vmatprep.subr.mxu0 0.0
      %562 = vmatpush1.msra.mxu0 0.0
      %563 = vmatprep.subr.mxu0 0.0
      %564 = vmatpush1.msra.mxu0 0.0
      %565 = vmatprep.subr.mxu0 0.0
      %566 = vmatpush1.msra.mxu0 0.0
      %567 = vmatprep.subr.mxu0 0.0
      %568 = vmatpush1.msra.mxu0 0.0
      %569 = vmatprep.subr.mxu0 0.0
      %570 = vmatpush1.msra.mxu0 0.0
      %571 = vmatprep.subr.mxu0 0.0
      %572 = vmatpush1.msra.mxu0 0.0
      %573 = vmatprep.subr.mxu0 0.0
      %574 = vmatpush1.msra.mxu0 0.0
      %575 = vmatprep.subr.mxu0 0.0
      %576 = vmatpush1.msra.mxu0 0.0
      %577 = vmatprep.subr.mxu0 0.0
      %578 = vmatpush1.msra.mxu0 0.0
      %579 = vmatprep.subr.mxu0 0.0
      %580 = vmatpush1.msra.mxu0 0.0
      %581 = vmatprep.subr.mxu0 0.0
      %582 = vmatpush1.msra.mxu0 0.0
      %583 = vmatprep.subr.mxu0 0.0
      %584 = vmatpush1.msra.mxu0 0.0
      %585 = vmatprep.subr.mxu0 0.0
      %586 = vmatpush1.msra.mxu0 0.0
      %587 = vmatprep.subr.mxu0 0.0
      %588 = vmatpush1.msra.mxu0 0.0
      %589 = vmatprep.subr.mxu0 0.0
      %590 = vmatpush1.msra.mxu0 0.0
      %591 = vmatprep.subr.mxu0 0.0
      %592 = vmatpush1.msra.mxu0 0.0
      %593 = vmatprep.subr.mxu0 0.0
      %594 = vmatpush1.msra.mxu0 0.0
      %595 = vmatprep.subr.mxu0 0.0
      %596 = vmatpush1.msra.mxu0 0.0
      %597 = vmatprep.subr.mxu0 0.0
      %598 = vmatpush1.msra.mxu0 0.0
      %599 = vmatprep.subr.mxu0 0.0
      %600 = vmatpush1.msra.mxu0 0.0
      %601 = vmatprep.subr.mxu0 0.0
      %602 = vmatpush1.msra.mxu0 0.0
      %603 = vmatprep.subr.mxu0 0.0
      %604 = vmatpush1.msra.mxu0 0.0
      %605 = vmatprep.mubr.f32.mxu0 0.0
      %606 = vmatmul.mubr.f32.gmra.mrb[0].mxu0 %v535
      %v607 = vpop.f32.mrb[0].mxu0
      %v608 = vadd.f32 %v531, %v607
      %v609 = vpop.f32.mrb[0].mxu0
      %610 = vdwg.mxu0
      %vm611 = vcmask 15360
      %v612 = vsel %vm611, %v608, 0.0
      %613 = vadd.xlane.f32.xlu0 %v612
      %v614 = vpop.xlane.xlu0 %613
      %v615 = vxor.u32 %v614, 2147483648
      %v616 = vmul.f32 %v615, 1.442695
      %v617 = vpow.pop %v616
      %v618 = vadd.f32 %v617, 1.0
      %v619 = vrcp.pop %v618
      %v620 = vmul.f32 1.0, %v619
      %v621 = vmul.f32 %v430, %v620
      %v622 = vmul.f32 %v432, %v620
      %v623 = vrot.slane %v621, 4
      %v624 = vadd.f32 %v621, %v623
      %v625 = vrot.slane %v624, 2
      %v626 = vadd.f32 %v624, %v625
      %v627 = vrot.slane %v626, 1
      %v628 = vadd.f32 %v626, %v627
      %v629 = vrot.slane %v622, 4
      %v630 = vadd.f32 %v622, %v629
      %v631 = vrot.slane %v630, 2
      %v632 = vadd.f32 %v630, %v631
      %v633 = vrot.slane %v632, 1
      %v634 = vadd.f32 %v632, %v633
      %v635 = vrcp.pop 8.0
      %v636 = vmul.f32 %v628, %v635
      %v637 = vmul.f32 %v634, %v635
      %v638 = vrot.slane %v621, 4
      %v639 = vmax.f32 %v621, %v638
      %v640 = vrot.slane %v639, 2
      %v641 = vmax.f32 %v639, %v640
      %v642 = vrot.slane %v641, 1
      %v643 = vmax.f32 %v641, %v642
      %v644 = vrot.slane %v622, 4
      %v645 = vmax.f32 %v622, %v644
      %v646 = vrot.slane %v645, 2
      %v647 = vmax.f32 %v645, %v646
      %v648 = vrot.slane %v647, 1
      %v649 = vmax.f32 %v647, %v648
      %v650 = vld [vmem:[%s7] sm:$0xff]
      %v651 = vld [vmem:[%s7 + $0x8] sm:$0xff]
      %v652 = vld [vmem:[%s7 + $0x10] sm:$0xff]
      %v653 = vld [vmem:[%s7 + $0x18] sm:$0xff]
      %v654 = vld [vmem:[%s7 + $0x20] sm:$0xff]
      %v655 = vld [vmem:[%s7 + $0x28] sm:$0xff]
      %v656 = vld [vmem:[%s7 + $0x30] sm:$0xff]
      %v657 = vld [vmem:[%s7 + $0x38] sm:$0xff]
      %v658 = vld [vmem:[%s7 + $0x40] sm:$0xff]
      %v659 = vld [vmem:[%s7 + $0x48] sm:$0xff]
      %v660 = vld [vmem:[%s7 + $0x50] sm:$0xff]
      %v661 = vld [vmem:[%s7 + $0x58] sm:$0xff]
      %v662 = vld [vmem:[%s7 + $0x60] sm:$0xff]
      %v663 = vld [vmem:[%s7 + $0x68] sm:$0xff]
      %v664 = vld [vmem:[%s7 + $0x70] sm:$0xff]
      %v665 = vld [vmem:[%s7 + $0x78] sm:$0xff]
      %v666 = vld [vmem:[%s7 + $0x80] sm:$0xff]
      %v667 = vld [vmem:[%s7 + $0x88] sm:$0xff]
      %v668 = vld [vmem:[%s7 + $0x90] sm:$0xff]
      %v669 = vld [vmem:[%s7 + $0x98] sm:$0xff]
      %v670 = vld [vmem:[%s7 + $0xa0] sm:$0xff]
      %v671 = vld [vmem:[%s7 + $0xa8] sm:$0xff]
      %v672 = vld [vmem:[%s7 + $0xb0] sm:$0xff]
      %v673 = vld [vmem:[%s7 + $0xb8] sm:$0xff]
      %v674 = vld [vmem:[%s7 + $0xc0] sm:$0xff]
      %v675 = vld [vmem:[%s7 + $0xc8] sm:$0xff]
      %v676 = vld [vmem:[%s7 + $0xd0] sm:$0xff]
      %v677 = vld [vmem:[%s7 + $0xd8] sm:$0xff]
      %v678 = vld [vmem:[%s7 + $0xe0] sm:$0xff]
      %v679 = vld [vmem:[%s7 + $0xe8] sm:$0xff]
      %v680 = vld [vmem:[%s7 + $0xf0] sm:$0xff]
      %v681 = vld [vmem:[%s7 + $0xf8] sm:$0xff]
      %v682 = vld [vmem:[%s7 + $0x100] sm:$0xff]
      %v683 = vld [vmem:[%s7 + $0x108] sm:$0xff]
      %v684 = vld [vmem:[%s7 + $0x110] sm:$0xff]
      %v685 = vld [vmem:[%s7 + $0x118] sm:$0xff]
      %v686 = vld [vmem:[%s7 + $0x120] sm:$0xff]
      %v687 = vld [vmem:[%s7 + $0x128] sm:$0xff]
      %v688 = vld [vmem:[%s7 + $0x130] sm:$0xff]
      %v689 = vld [vmem:[%s7 + $0x138] sm:$0xff]
      %v690 = vld [vmem:[%s7 + $0x140] sm:$0xff]
      %v691 = vld [vmem:[%s7 + $0x148] sm:$0xff]
      %v692 = vld [vmem:[%s7 + $0x150] sm:$0xff]
      %v693 = vld [vmem:[%s7 + $0x158] sm:$0xff]
      %v694 = vld [vmem:[%s7 + $0x160] sm:$0xff]
      %v695 = vld [vmem:[%s7 + $0x168] sm:$0xff]
      %v696 = vld [vmem:[%s7 + $0x170] sm:$0xff]
      %v697 = vld [vmem:[%s7 + $0x178] sm:$0xff]
      %v698 = vld [vmem:[%s7 + $0x180] sm:$0xff]
      %v699 = vld [vmem:[%s7 + $0x188] sm:$0xff]
      %v700 = vld [vmem:[%s7 + $0x190] sm:$0xff]
      %v701 = vld [vmem:[%s7 + $0x198] sm:$0xff]
      %v702 = vld [vmem:[%s7 + $0x1a0] sm:$0xff]
      %v703 = vld [vmem:[%s7 + $0x1a8] sm:$0xff]
      %v704 = vld [vmem:[%s7 + $0x1b0] sm:$0xff]
      %v705 = vld [vmem:[%s7 + $0x1b8] sm:$0xff]
      %v706 = vld [vmem:[%s7 + $0x1c0] sm:$0xff]
      %v707 = vld [vmem:[%s7 + $0x1c8] sm:$0xff]
      %v708 = vld [vmem:[%s7 + $0x1d0] sm:$0xff]
      %v709 = vld [vmem:[%s7 + $0x1d8] sm:$0xff]
      %v710 = vld [vmem:[%s7 + $0x1e0] sm:$0xff]
      %v711 = vld [vmem:[%s7 + $0x1e8] sm:$0xff]
      %v712 = vld [vmem:[%s7 + $0x1f0] sm:$0xff]
      %v713 = vld [vmem:[%s7 + $0x1f8] sm:$0xff]
      %v714 = vld [vmem:[%s7 + $0x200] sm:$0xff]
      %v715 = vld [vmem:[%s7 + $0x208] sm:$0xff]
      %v716 = vld [vmem:[%s7 + $0x210] sm:$0xff]
      %v717 = vld [vmem:[%s7 + $0x218] sm:$0xff]
      %v718 = vld [vmem:[%s7 + $0x220] sm:$0xff]
      %v719 = vld [vmem:[%s7 + $0x228] sm:$0xff]
      %v720 = vld [vmem:[%s7 + $0x230] sm:$0xff]
      %v721 = vld [vmem:[%s7 + $0x238] sm:$0xff]
      %v722 = vld [vmem:[%s7 + $0x240] sm:$0xff]
      %v723 = vld [vmem:[%s7 + $0x248] sm:$0xff]
      %v724 = vld [vmem:[%s7 + $0x250] sm:$0xff]
      %v725 = vld [vmem:[%s7 + $0x258] sm:$0xff]
      %v726 = vld [vmem:[%s7 + $0x260] sm:$0xff]
      %v727 = vld [vmem:[%s7 + $0x268] sm:$0xff]
      %v728 = vld [vmem:[%s7 + $0x270] sm:$0xff]
      %v729 = vld [vmem:[%s7 + $0x278] sm:$0xff]
      %v730 = vld [vmem:[%s7 + $0x280] sm:$0xff]
      %v731 = vld [vmem:[%s7 + $0x288] sm:$0xff]
      %v732 = vld [vmem:[%s7 + $0x290] sm:$0xff]
      %v733 = vld [vmem:[%s7 + $0x298] sm:$0xff]
      %v734 = vld [vmem:[%s7 + $0x2a0] sm:$0xff]
      %v735 = vld [vmem:[%s7 + $0x2a8] sm:$0xff]
      %v736 = vld [vmem:[%s7 + $0x2b0] sm:$0xff]
      %v737 = vld [vmem:[%s7 + $0x2b8] sm:$0xff]
      %v738 = vld [vmem:[%s7 + $0x2c0] sm:$0xff]
      %v739 = vld [vmem:[%s7 + $0x2c8] sm:$0xff]
      %v740 = vld [vmem:[%s7 + $0x2d0] sm:$0xff]
      %v741 = vld [vmem:[%s7 + $0x2d8] sm:$0xff]
      %v742 = vld [vmem:[%s7 + $0x2e0] sm:$0xff]
      %v743 = vld [vmem:[%s7 + $0x2e8] sm:$0xff]
      %v744 = vld [vmem:[%s7 + $0x2f0] sm:$0xff]
      %v745 = vld [vmem:[%s7 + $0x2f8] sm:$0xff]
      %v746 = vld [vmem:[%s7 + $0x300] sm:$0xff]
      %v747 = vld [vmem:[%s7 + $0x308] sm:$0xff]
      %v748 = vld [vmem:[%s7 + $0x310] sm:$0xff]
      %v749 = vld [vmem:[%s7 + $0x318] sm:$0xff]
      %v750 = vld [vmem:[%s7 + $0x320] sm:$0xff]
      %v751 = vld [vmem:[%s7 + $0x328] sm:$0xff]
      %v752 = vld [vmem:[%s7 + $0x330] sm:$0xff]
      %v753 = vld [vmem:[%s7 + $0x338] sm:$0xff]
      %v754 = vld [vmem:[%s7 + $0x340] sm:$0xff]
      %v755 = vld [vmem:[%s7 + $0x348] sm:$0xff]
      %v756 = vld [vmem:[%s7 + $0x350] sm:$0xff]
      %v757 = vld [vmem:[%s7 + $0x358] sm:$0xff]
      %v758 = vld [vmem:[%s7 + $0x360] sm:$0xff]
      %v759 = vld [vmem:[%s7 + $0x368] sm:$0xff]
      %v760 = vld [vmem:[%s7 + $0x370] sm:$0xff]
      %v761 = vld [vmem:[%s7 + $0x378] sm:$0xff]
      %v762 = vld [vmem:[%s7 + $0x380] sm:$0xff]
      %v763 = vld [vmem:[%s7 + $0x388] sm:$0xff]
      %v764 = vld [vmem:[%s7 + $0x390] sm:$0xff]
      %v765 = vld [vmem:[%s7 + $0x398] sm:$0xff]
      %v766 = vld [vmem:[%s7 + $0x3a0] sm:$0xff]
      %v767 = vld [vmem:[%s7 + $0x3a8] sm:$0xff]
      %v768 = vld [vmem:[%s7 + $0x3b0] sm:$0xff]
      %v769 = vld [vmem:[%s7 + $0x3b8] sm:$0xff]
      %v770 = vld [vmem:[%s7 + $0x3c0] sm:$0xff]
      %v771 = vld [vmem:[%s7 + $0x3c8] sm:$0xff]
      %v772 = vld [vmem:[%s7 + $0x3d0] sm:$0xff]
      %v773 = vld [vmem:[%s7 + $0x3d8] sm:$0xff]
      %v774 = vld [vmem:[%s7 + $0x3e0] sm:$0xff]
      %v775 = vld [vmem:[%s7 + $0x3e8] sm:$0xff]
      %v776 = vld [vmem:[%s7 + $0x3f0] sm:$0xff]
      %v777 = vld [vmem:[%s7 + $0x3f8] sm:$0xff]
      %s778 = sld [smem:[#allocation2]]
      %v779 = vstv %s778
      %780 = vmatprep.subr.mxu0 %v651
      %781 = vmatpush1.msra.mxu0 %v650
      %782 = vmatprep.subr.mxu0 %v653
      %783 = vmatpush1.msra.mxu0 %v652
      %784 = vmatprep.subr.mxu0 %v655
      %785 = vmatpush1.msra.mxu0 %v654
      %786 = vmatprep.subr.mxu0 %v657
      %787 = vmatpush1.msra.mxu0 %v656
      %788 = vmatprep.subr.mxu0 %v659
      %789 = vmatpush1.msra.mxu0 %v658
      %790 = vmatprep.subr.mxu0 %v661
      %791 = vmatpush1.msra.mxu0 %v660
      %792 = vmatprep.subr.mxu0 %v663
      %793 = vmatpush1.msra.mxu0 %v662
      %794 = vmatprep.subr.mxu0 %v665
      %795 = vmatpush1.msra.mxu0 %v664
      %796 = vmatprep.subr.mxu0 %v667
      %797 = vmatpush1.msra.mxu0 %v666
      %798 = vmatprep.subr.mxu0 %v669
      %799 = vmatpush1.msra.mxu0 %v668
      %800 = vmatprep.subr.mxu0 %v671
      %801 = vmatpush1.msra.mxu0 %v670
      %802 = vmatprep.subr.mxu0 %v673
      %803 = vmatpush1.msra.mxu0 %v672
      %804 = vmatprep.subr.mxu0 %v675
      %805 = vmatpush1.msra.mxu0 %v674
      %806 = vmatprep.subr.mxu0 %v677
      %807 = vmatpush1.msra.mxu0 %v676
      %808 = vmatprep.subr.mxu0 %v679
      %809 = vmatpush1.msra.mxu0 %v678
      %810 = vmatprep.subr.mxu0 %v681
      %811 = vmatpush1.msra.mxu0 %v680
      %812 = vmatprep.subr.mxu0 %v683
      %813 = vmatpush1.msra.mxu0 %v682
      %814 = vmatprep.subr.mxu0 %v685
      %815 = vmatpush1.msra.mxu0 %v684
      %816 = vmatprep.subr.mxu0 %v687
      %817 = vmatpush1.msra.mxu0 %v686
      %818 = vmatprep.subr.mxu0 %v689
      %819 = vmatpush1.msra.mxu0 %v688
      %820 = vmatprep.subr.mxu0 %v691
      %821 = vmatpush1.msra.mxu0 %v690
      %822 = vmatprep.subr.mxu0 %v693
      %823 = vmatpush1.msra.mxu0 %v692
      %824 = vmatprep.subr.mxu0 %v695
      %825 = vmatpush1.msra.mxu0 %v694
      %826 = vmatprep.subr.mxu0 %v697
      %827 = vmatpush1.msra.mxu0 %v696
      %828 = vmatprep.subr.mxu0 %v699
      %829 = vmatpush1.msra.mxu0 %v698
      %830 = vmatprep.subr.mxu0 %v701
      %831 = vmatpush1.msra.mxu0 %v700
      %832 = vmatprep.subr.mxu0 %v703
      %833 = vmatpush1.msra.mxu0 %v702
      %834 = vmatprep.subr.mxu0 %v705
      %835 = vmatpush1.msra.mxu0 %v704
      %836 = vmatprep.subr.mxu0 %v707
      %837 = vmatpush1.msra.mxu0 %v706
      %838 = vmatprep.subr.mxu0 %v709
      %839 = vmatpush1.msra.mxu0 %v708
      %840 = vmatprep.subr.mxu0 %v711
      %841 = vmatpush1.msra.mxu0 %v710
      %842 = vmatprep.subr.mxu0 %v713
      %843 = vmatpush1.msra.mxu0 %v712
      %844 = vmatprep.mubr.f32.mxu0 %v637
      %845 = vmatmul.mubr.f32.gmra.mrb[0].mxu0 %v636
      %v846 = vpop.f32.mrb[0].mxu0
      %v847 = vadd.f32 %v779, %v846
      %v848 = vpop.f32.mrb[0].mxu0
      %v849 = vadd.f32 %v779, %v848
      %850 = vdwg.mxu0
      %851 = vmatprep.subr.mxu0 %v715
      %852 = vmatpush1.msra.mxu0 %v714
      %853 = vmatprep.subr.mxu0 %v717
      %854 = vmatpush1.msra.mxu0 %v716
      %855 = vmatprep.subr.mxu0 %v719
      %856 = vmatpush1.msra.mxu0 %v718
      %857 = vmatprep.subr.mxu0 %v721
      %858 = vmatpush1.msra.mxu0 %v720
      %859 = vmatprep.subr.mxu0 %v723
      %860 = vmatpush1.msra.mxu0 %v722
      %861 = vmatprep.subr.mxu0 %v725
      %862 = vmatpush1.msra.mxu0 %v724
      %863 = vmatprep.subr.mxu0 %v727
      %864 = vmatpush1.msra.mxu0 %v726
      %865 = vmatprep.subr.mxu0 %v729
      %866 = vmatpush1.msra.mxu0 %v728
      %867 = vmatprep.subr.mxu0 %v731
      %868 = vmatpush1.msra.mxu0 %v730
      %869 = vmatprep.subr.mxu0 %v733
      %870 = vmatpush1.msra.mxu0 %v732
      %871 = vmatprep.subr.mxu0 %v735
      %872 = vmatpush1.msra.mxu0 %v734
      %873 = vmatprep.subr.mxu0 %v737
      %874 = vmatpush1.msra.mxu0 %v736
      %875 = vmatprep.subr.mxu0 %v739
      %876 = vmatpush1.msra.mxu0 %v738
      %877 = vmatprep.subr.mxu0 %v741
      %878 = vmatpush1.msra.mxu0 %v740
      %879 = vmatprep.subr.mxu0 %v743
      %880 = vmatpush1.msra.mxu0 %v742
      %881 = vmatprep.subr.mxu0 %v745
      %882 = vmatpush1.msra.mxu0 %v744
      %883 = vmatprep.subr.mxu0 %v747
      %884 = vmatpush1.msra.mxu0 %v746
      %885 = vmatprep.subr.mxu0 %v749
      %886 = vmatpush1.msra.mxu0 %v748
      %887 = vmatprep.subr.mxu0 %v751
      %888 = vmatpush1.msra.mxu0 %v750
      %889 = vmatprep.subr.mxu0 %v753
      %890 = vmatpush1.msra.mxu0 %v752
      %891 = vmatprep.subr.mxu0 %v755
      %892 = vmatpush1.msra.mxu0 %v754
      %893 = vmatprep.subr.mxu0 %v757
      %894 = vmatpush1.msra.mxu0 %v756
      %895 = vmatprep.subr.mxu0 %v759
      %896 = vmatpush1.msra.mxu0 %v758
      %897 = vmatprep.subr.mxu0 %v761
      %898 = vmatpush1.msra.mxu0 %v760
      %899 = vmatprep.subr.mxu0 %v763
      %900 = vmatpush1.msra.mxu0 %v762
      %901 = vmatprep.subr.mxu0 %v765
      %902 = vmatpush1.msra.mxu0 %v764
      %903 = vmatprep.subr.mxu0 %v767
      %904 = vmatpush1.msra.mxu0 %v766
      %905 = vmatprep.subr.mxu0 %v769
      %906 = vmatpush1.msra.mxu0 %v768
      %907 = vmatprep.subr.mxu0 %v771
      %908 = vmatpush1.msra.mxu0 %v770
      %909 = vmatprep.subr.mxu0 %v773
      %910 = vmatpush1.msra.mxu0 %v772
      %911 = vmatprep.subr.mxu0 %v775
      %912 = vmatpush1.msra.mxu0 %v774
      %913 = vmatprep.subr.mxu0 %v777
      %914 = vmatpush1.msra.mxu0 %v776
      %915 = vmatprep.mubr.f32.mxu0 %v649
      %916 = vmatmul.mubr.f32.gmra.mrb[0].mxu0 %v643
      %v917 = vpop.f32.mrb[0].mxu0
      %v918 = vadd.f32 %v847, %v917
      %v919 = vpop.f32.mrb[0].mxu0
      %v920 = vadd.f32 %v849, %v919
      %921 = vdwg.mxu0
      %v922 = vxor.u32 %v918, 2147483648
      %v923 = vxor.u32 %v920, 2147483648
      %v924 = vmul.f32 %v922, 1.442695
      %v925 = vpow.pop %v924
      %v926 = vmul.f32 %v923, 1.442695
      %v927 = vpow.pop %v926
      %v928 = vadd.f32 %v925, 1.0
      %v929 = vadd.f32 %v927, 1.0
      %v930 = vrcp.pop %v928
      %v931 = vmul.f32 1.0, %v930
      %v932 = vrcp.pop %v929
      %v933 = vmul.f32 1.0, %v932
      %v934 = vlaneseq
      %v935 = vshrl.u32 %v934, 7
      %v936 = vsub.s32 0, %v935
      %v937 = vrot.slane %v931, %v936
      %v938 = vlaneseq
      %v939 = vshrl.u32 %v938, 7
      %v940 = vsub.s32 0, %v939
      %v941 = vrot.slane %v933, %v940
      %v942 = vmul.f32 %v621, %v937
      %v943 = vmul.f32 %v622, %v941
      %v944 = vadd.f32 %v430, %v942
      %v945 = vadd.f32 %v432, %v943
      %946 = vst [vmem:[%s333] sm:$0xff] %v944
      %947 = vst [vmem:[%s333 + $0x8] sm:$0xff] %v945
      %p948 = scmp.lt.s32.totalorder %s21, 1
      %s949 = scalar_select %p948, %s21, 1
      %s950 = smul.addr %s949, 2
      %s951 = smul.addr %s950, 8
      %s952 = scalar_lea.vmem %s9, %s951
      // Predicated region
      $region57: #{residual_block_cbam.1} parent=55 // pred_check
        %p953 = pneg %p233
      $region58: #{residual_block_cbam.1} parent=55 // pred_check_branch
        %955 = sbr.rel (%p953) target = $region60
      $region59: #{residual_block_cbam.1} parent=55 // pred_region
        _
      $region60: #{residual_block_cbam.1} parent=55 // pred_fallthru
        _
    $region56: #{residual_block_cbam.1} parent=5 // pred_fallthru
      _
    %p956 = scmp.le.s32.totalorder 2, %s16
    // Predicated region
    $region61: #{residual_block_cbam.1} parent=5 // pred_check
      %p957 = pneg %p956
    $region62: #{residual_block_cbam.1} parent=5 // pred_check_branch
      %959 = sbr.rel (%p957) target = $region64
    $region63: #{residual_block_cbam.1} parent=5 // pred_region
      %s960 = ssub.s32 %s16, 2
      // Predicated region
      $region65: #{residual_block_cbam.1} parent=63 // pred_check
        %p961 = pneg %p239
      $region66: #{residual_block_cbam.1} parent=63 // pred_check_branch
        %963 = sbr.rel (%p961) target = $region68
      $region67: #{residual_block_cbam.1} parent=63 // pred_region
        %p964 = scmp.lt.s32.totalorder %s22, 1
        %s965 = scalar_select %p964, %s22, 1
        %s966 = smul.addr %s965, 2
        %s967 = smul.addr %s966, 8
        %s968 = scalar_lea.vmem %s9, %s967
      $region68: #{residual_block_cbam.1} parent=63 // pred_fallthru
        _
    $region64: #{residual_block_cbam.1} parent=5 // pred_fallthru
      _
  $region6: #{residual_block_cbam.1} parent=0 // loop_footer
    %s20 = sadd.s32 1, %s16
  $region7: #{residual_block_cbam.1} parent=0 // loop_footer_branch
    %15 = sbr.rel target = $region3
  $region8: #{residual_block_cbam.1} parent=0 // loop_exit
    _

</llo_original>
